<compile_context>
chip_gen: v5e
topology: v5e:2x2
jax: 0.10.0
libtpu: 0.0.40
codegen_flags: <defaults>
</compile_context>

<pallas_src>
import functools
import math

import jax
import jax.numpy as jnp
from jax import lax
from jax.experimental import pallas as pl
from jax.experimental.pallas import tpu as pltpu


def _round_up(a, b):
    return ((a + b - 1) // b) * b


# --------------------------------------------------------------------------------------
# Kernel 1: row-blocked linear projection  y = x @ W_t + b   (W_t already transposed)
# --------------------------------------------------------------------------------------
def _linear_kernel(compute_dtype, x_ref, w_ref, b_ref, o_ref):
    y = jnp.dot(x_ref[...].astype(compute_dtype), w_ref[...],
                preferred_element_type=jnp.float32) + b_ref[...]
    o_ref[...] = y.astype(o_ref.dtype)


def _blocked_linear(x2d, w_t, b_row, *, out_dtype, compute_dtype, tile_rows=256):
    """(R, Din) @ (Din, Dout) + (1, Dout); rows blocked; output emitted in out_dtype."""
    R, Din = x2d.shape
    Dout = w_t.shape[1]
    TR = tile_rows if R >= tile_rows else max(8, _round_up(R, 8))
    Rp = _round_up(R, TR)
    if Rp != R:
        x2d = jnp.pad(x2d, ((0, Rp - R), (0, 0)))

    out = pl.pallas_call(
        functools.partial(_linear_kernel, compute_dtype),
        out_shape=jax.ShapeDtypeStruct((Rp, Dout), out_dtype),
        grid_spec=pltpu.PrefetchScalarGridSpec(
            num_scalar_prefetch=0,
            grid=(Rp // TR,),
            in_specs=[
                pl.BlockSpec((TR, Din), lambda r: (r, 0)),
                # constant block index -> DMA'd once.
                # TODO(synk): single-buffer (pipeline_mode=pl.Buffered(1)) and add a Dout
                # grid axis for very large D on v7x so the weight block is (Din, TN).
                pl.BlockSpec((Din, Dout), lambda r: (0, 0)),
                pl.BlockSpec((1, Dout), lambda r: (0, 0)),
            ],
            out_specs=pl.BlockSpec((TR, Dout), lambda r: (r, 0)),
        ),
        compiler_params=pltpu.CompilerParams(dimension_semantics=("parallel",)),
    )(x2d, w_t, b_row)
    return out[:R]


# --------------------------------------------------------------------------------------
# Kernel 2: windowed flash-style sliding-window attention
# --------------------------------------------------------------------------------------
def _swa_kernel(window_size, t_ctx, n_kb, kb_off, compute_dtype,
                x_ref, q_ref, k_ref, v_ref, kpad_ref, vpad_ref, wo_ref, bo_ref,
                o_ref, m_scr, l_scr, acc_scr, ocat_scr):
    # x_ref   : (1, TQ, D)      residual input tile (f32)
    # q_ref   : (1, H, TQ, hd)  projected queries (1/sqrt(hd) already folded in)
    # k_ref   : (1, H, TK, hd)  one key block of this tile's window
    # v_ref   : (1, H, TK, hd)  matching value block
    # kpad/vpad: (H, hd)        projected zero-pad row (= bk / bv per head), f32
    # wo_ref  : (D, D)          Wo^T,  bo_ref: (1, D)
    # o_ref   : (1, TQ, D)
    w = window_size
    half = w // 2
    T = t_ctx
    t = pl.program_id(1)
    kk = pl.program_id(2)

    qh = q_ref[0]                              # (H, TQ, hd)
    H, tq, hd = qh.shape
    tk = k_ref.shape[2]

    # ---- first key-block step: init accumulators with the zero-pad-row contribution ----
    @pl.when(kk == 0)
    def _():
        gq = t * tq + lax.broadcasted_iota(jnp.int32, (tq, 1), 0)            # global q idx
        n_real = jnp.maximum(jnp.minimum(gq + half + 2, T) - jnp.maximum(gq - half, 0), 0)
        pad_cnt = jnp.maximum(w - n_real, 0).astype(jnp.float32)             # (TQ, 1)
        # every explicit zero-pad row of the module projects to (bk, bv): one score,
        # softmax weight multiplied by pad_cnt.
        s_pad = jnp.sum(qh.astype(jnp.float32) * kpad_ref[...][:, None, :],
                        axis=-1, keepdims=True)                              # (H, TQ, 1)
        m_scr[...] = jnp.where(pad_cnt > 0, s_pad, -1e30)
        l_scr[...] = jnp.broadcast_to(pad_cnt[None], l_scr.shape)
        acc_scr[...] = pad_cnt[None] * vpad_ref[...][:, None, :]

    # ---- one TK-wide key block of the sliding window (skipped if out of range) ---------
    kb_int = t + kk - kb_off                   # intended key block for this step

    @pl.when(jnp.logical_and(kb_int >= 0, kb_int < n_kb))
    def _():
        kh = k_ref[0]                          # (H, TK, hd)
        vh = v_ref[0]
        s = jnp.einsum('hqd,hkd->hqk', qh, kh,
                       preferred_element_type=jnp.float32)                   # (H, TQ, TK)
        gq = t * tq + lax.broadcasted_iota(jnp.int32, (tq, tk), 0)
        gk = kb_int * tk + lax.broadcasted_iota(jnp.int32, (tq, tk), 1)
        # window = [max(0, i-half), min(i+half+2, T)); the "+2" reproduces right+1.
        valid = (gk >= jnp.maximum(gq - half, 0)) & (gk < jnp.minimum(gq + half + 2, T))
        s = jnp.where(valid[None], s, -1e30)

        m_prev = m_scr[...]
        m_new = jnp.maximum(m_prev, jnp.max(s, axis=-1, keepdims=True))
        alpha = jnp.exp(m_prev - m_new)
        p = jnp.exp(s - m_new)
        l_scr[...] = alpha * l_scr[...] + jnp.sum(p, axis=-1, keepdims=True)
        acc_scr[...] = alpha * acc_scr[...] + jnp.einsum(
            'hqk,hkd->hqd', p.astype(compute_dtype), vh,
            preferred_element_type=jnp.float32)
        m_scr[...] = m_new

    # ---- last step: normalize, concat heads (lane-dense), out-projection, residual -----
    @pl.when(kk == pl.num_programs(2) - 1)
    def _():
        inv = pl.reciprocal(l_scr[...], approx=True)
        inv = inv * (2.0 - l_scr[...] * inv)          # one Newton step; still EUP recip
        o_n = acc_scr[...] * inv                      # (H, TQ, hd)
        for h in range(H):                            # static head-concat into (TQ, D)
            ocat_scr[:, h * hd:(h + 1) * hd] = o_n[h].astype(ocat_scr.dtype)
        out = x_ref[0] + bo_ref[...] + jnp.dot(       # single K=D MXU matmul
            ocat_scr[...], wo_ref[...], preferred_element_type=jnp.float32)
        o_ref[0] = out.astype(o_ref.dtype)


def sliding_window_attention(x, context, params, *, window_size, num_heads,
                             compute_dtype=jnp.float32, tq_max=256):
    """Forward pass of SlidingWindowAttention built from Pallas TPU kernels.

    compute_dtype: MXU-input / Q-K-V storage dtype. bfloat16 is the right choice on
      v5e / v6e / v7x for throughput and HBM traffic (softmax, masks and all accumulation
      stay float32); keep float32 when bit-accuracy against an f32 reference matters.
    tq_max: query rows per grid step -- 128 on v5e (128-wide MXU, small scoped-VMEM
      default), 256 on v6e / v7x.
    """
    B, N, D = x.shape
    T = context.shape[1]
    assert D % num_heads == 0
    H = num_heads
    hd = D // H
    cd = compute_dtype
    inv_sqrt = 1.0 / math.sqrt(hd)

    x = x.astype(jnp.float32)
    context = context.astype(jnp.float32)

    # ---- tiling: key blocks mirror the query tiling so a window touches KB = O(1) blocks
    TQ = tq_max if N >= tq_max else max(8, _round_up(N, 8))
    Np = _round_up(N, TQ)
    TK = TQ
    Tp = _round_up(T, TK)
    n_kb = Tp // TK
    half = window_size // 2
    kb_off = (half + TK - 1) // TK                 # blocks reaching left of the tile
    KB = kb_off + (TQ + half) // TK + 1            # static #key blocks per query tile

    # ---- K and V projected ONCE over the (padded) context with the fused [K|V] weight ----
    ctx_p = context if Tp == T else jnp.pad(context, ((0, 0), (0, Tp - T), (0, 0)))
    wkv_t = jnp.concatenate([params["Wk"].T, params["Wv"].T], axis=1).astype(cd)
    bkv = jnp.concatenate([params["bk"], params["bv"]]).reshape(1, 2 * D)
    kv = _blocked_linear(ctx_p.reshape(B * Tp, D), wkv_t, bkv,
                         out_dtype=cd, compute_dtype=cd).reshape(B, Tp, 2 * D)
    # head-split relayout happens in compute_dtype (half the HBM traffic of f32).
    # TODO(synk): emit head-major (H, B, T, hd) directly from the projection kernel via a
    # head grid axis on the out_spec to remove this XLA transpose entirely.
    k_heads = kv[:, :, :D].reshape(B, Tp, H, hd).transpose(0, 2, 1, 3)       # (B, H, Tp, hd)
    v_heads = kv[:, :, D:].reshape(B, Tp, H, hd).transpose(0, 2, 1, 3)

    # ---- Q projection; 1/sqrt(hd) folded into Wq / bq once (free) ----
    x_p = x if Np == N else jnp.pad(x, ((0, 0), (0, Np - N), (0, 0)))
    wq_t = (params["Wq"].T * inv_sqrt).astype(cd)
    bq_row = (params["bq"] * inv_sqrt).reshape(1, D)
    q2d = _blocked_linear(x_p.reshape(B * Np, D), wq_t, bq_row,
                          out_dtype=cd, compute_dtype=cd)
    q_heads = q2d.reshape(B, Np, H, hd).transpose(0, 2, 1, 3)                # (B, H, Np, hd)

    # pad rows of a short window project to exactly (bk, bv): tiny constant side blocks
    k_pad = params["bk"].reshape(H, hd).astype(jnp.float32)
    v_pad = params["bv"].reshape(H, hd).astype(jnp.float32)
    wo_t = params["Wo"].T.astype(cd)                                         # (D, D)
    bo_row = params["bo"].reshape(1, D)

    # ---- VMEM budget from actual block sizes (+ headroom), not a hard-coded 32 MiB ----
    cdb = jnp.dtype(cd).itemsize
    block_bytes = (2 * TQ * D * 4                  # x tile (double-buffered)
                   + 2 * TQ * D * cdb              # q tile
                   + 2 * 2 * H * TK * hd * cdb     # k + v window blocks
                   + 2 * D * D * cdb               # Wo (constant; see TODO below)
                   + 4 * D * 4                     # bo / pad rows slack
                   + 2 * TQ * D * 4)               # out tile
    scratch_bytes = 2 * H * TQ * 4 + H * TQ * hd * 4 + TQ * D * cdb
    interm_bytes = 4 * H * TQ * TK * 4             # live f32 score / prob tiles
    vmem_limit = int(min(max(int(1.3 * (block_bytes + scratch_bytes + interm_bytes))
                             + (4 << 20), 32 << 20), 100 << 20))

    kernel = functools.partial(_swa_kernel, window_size, T, n_kb, kb_off, cd)
    kv_idx = lambda b, t, kk: (
        b, 0, jnp.maximum(jnp.minimum(t + kk - kb_off, n_kb - 1), 0), 0)

    out = pl.pallas_call(
        kernel,
        out_shape=jax.ShapeDtypeStruct((B, Np, D), jnp.float32),
        grid_spec=pltpu.PrefetchScalarGridSpec(
            num_scalar_prefetch=0,
            grid=(B, Np // TQ, KB),                # KB = O(window / TQ) blocks, not O(T)
            in_specs=[
                pl.BlockSpec((1, TQ, D), lambda b, t, kk: (b, t, 0)),        # residual x
                pl.BlockSpec((1, H, TQ, hd), lambda b, t, kk: (b, 0, t, 0)), # Q heads
                pl.BlockSpec((1, H, TK, hd), kv_idx),                        # K window block
                pl.BlockSpec((1, H, TK, hd), kv_idx),                        # V window block
                pl.BlockSpec((H, hd), lambda b, t, kk: (0, 0)),              # pad key  (bk)
                pl.BlockSpec((H, hd), lambda b, t, kk: (0, 0)),              # pad value (bv)
                # TODO(synk): pipeline_mode=pl.Buffered(1) on the two constant blocks below
                # (Wo / bo) to drop their second VMEM buffer on v7x.
                pl.BlockSpec((D, D), lambda b, t, kk: (0, 0)),               # Wo^T
                pl.BlockSpec((1, D), lambda b, t, kk: (0, 0)),               # bo
            ],
            out_specs=pl.BlockSpec((1, TQ, D), lambda b, t, kk: (b, t, 0)),
            scratch_shapes=[
                pltpu.VMEM((H, TQ, 1), jnp.float32),    # running max
                pltpu.VMEM((H, TQ, 1), jnp.float32),    # running denom
                pltpu.VMEM((H, TQ, hd), jnp.float32),   # running PV accumulator
                pltpu.VMEM((TQ, D), cd),                # lane-dense head-concat buffer
            ],
        ),
        compiler_params=pltpu.CompilerParams(
            dimension_semantics=("parallel", "parallel", "arbitrary"),
            vmem_limit_bytes=vmem_limit),
    )(x_p, q_heads, k_heads, v_heads, k_pad, v_pad, wo_t, bo_row)

    return out[:, :N, :]


def reference_forward(x, context, params, *, window_size, num_heads):
    """Pure-JAX replica of the PyTorch forward (correctness check)."""
    B, N, D = x.shape
    T = context.shape[1]
    hd = D // num_heads
    Wq, Wk, Wv, Wo = params["Wq"], params["Wk"], params["Wv"], params["Wo"]
    bq, bk, bv, bo = params["bq"], params["bk"], params["bv"], params["bo"]
    outs = []
    for i in range(N):
        left = max(0, i - window_size // 2)
        right = min(T, i + window_size // 2 + 1)
        cw = context[:, left:right + 1, :]
        if cw.shape[1] < window_size:
            pad = jnp.zeros((B, window_size - cw.shape[1], D), x.dtype)
            cw = jnp.concatenate([cw, pad], axis=1)
        Kl = cw.shape[1]
        Q = x[:, i:i + 1, :]
        q = Q @ Wq.T + bq
        k = cw @ Wk.T + bk
        v = cw @ Wv.T + bv
        qh = q.reshape(B, 1, num_heads, hd).transpose(0, 2, 1, 3)
        kh = k.reshape(B, Kl, num_heads, hd).transpose(0, 2, 1, 3)
        vh = v.reshape(B, Kl, num_heads, hd).transpose(0, 2, 1, 3)
        s = jnp.einsum('bhqd,bhkd->bhqk', qh, kh) / math.sqrt(hd)
        p = jax.nn.softmax(s, axis=-1)
        o = jnp.einsum('bhqk,bhkd->bhqd', p, vh)
        o = o.transpose(0, 2, 1, 3).reshape(B, 1, D)
        o = o @ Wo.T + bo
        outs.append(o[:, 0, :] + x[:, i, :])
    return jnp.stack(outs, axis=1)


if __name__ == "__main__":
    # N > T so short / empty windows (and therefore the zero-pad softmax path) are hit.
    B, N, T, D = 2, 12, 8, 32
    num_heads = 4
    window_size = 4

    key = jax.random.PRNGKey(0)
    ks = jax.random.split(key, 10)
    scale_w = 1.0 / math.sqrt(D)
    params = {
        "Wq": jax.random.normal(ks[0], (D, D), jnp.float32) * scale_w,
        "Wk": jax.random.normal(ks[1], (D, D), jnp.float32) * scale_w,
        "Wv": jax.random.normal(ks[2], (D, D), jnp.float32) * scale_w,
        "Wo": jax.random.normal(ks[3], (D, D), jnp.float32) * scale_w,
        "bq": jax.random.normal(ks[4], (D,), jnp.float32) * 0.05,
        "bk": jax.random.normal(ks[5], (D,), jnp.float32) * 0.05,
        "bv": jax.random.normal(ks[6], (D,), jnp.float32) * 0.05,
        "bo": jax.random.normal(ks[7], (D,), jnp.float32) * 0.05,
    }
    x = jax.random.normal(ks[8], (B, N, D), jnp.float32)
    context = jax.random.normal(ks[9], (B, T, D), jnp.float32)

    ref = jax.block_until_ready(
        reference_forward(x, context, params,
                          window_size=window_size, num_heads=num_heads))

    # float32 path: bit-accurate reference comparison (right choice on v5e if exactness
    # vs an f32 baseline is required).
    out_f32 = jax.block_until_ready(
        sliding_window_attention(x, context, params, window_size=window_size,
                                 num_heads=num_heads, compute_dtype=jnp.float32))
    assert out_f32.shape == (B, N, D)
    err_f32 = float(jnp.max(jnp.abs(out_f32 - ref)))
    assert err_f32 < 2e-3, f"f32 max abs error {err_f32}"

    # bfloat16 path (recommended on all three generations); Q/K/V stored in bf16,
    # softmax + accumulation stay float32 -> ~1e-2-level deviations expected.
    out_bf16 = jax.block_until_ready(
        sliding_window_attention(x, context, params, window_size=window_size,
                                 num_heads=num_heads, compute_dtype=jnp.bfloat16))
    err_bf16 = float(jnp.max(jnp.abs(out_bf16 - ref)))
    assert err_bf16 < 1.5e-1, f"bf16 max abs error {err_bf16}"

    print("KERNEL_OK")
</pallas_src>

<mosaic_0001>
module attributes {stable_mosaic.version = 11 : i64} {
  func.func @_linear_kernel(%arg0: i32, %arg1: memref<32x32xf32, #tpu.memory_space<vmem>>, %arg2: memref<32x64xf32, #tpu.memory_space<vmem>>, %arg3: memref<1x64xf32, #tpu.memory_space<vmem>>, %arg4: memref<32x64xf32, #tpu.memory_space<vmem>>) attributes {dimension_semantics = [#tpu.dimension_semantics<parallel>], iteration_bounds = array<i64: 1>, scalar_prefetch = 0 : i64, scratch_operands = 0 : i64, tpu.core_type = #tpu.core_type<tc>, window_params = [{transform_indices = @transform_0, window_bounds = array<i64: 32, 32>}, {pipeline_mode = #tpu.pipeline_mode<synchronous>, transform_indices = @transform_1, window_bounds = array<i64: 32, 64>}, {pipeline_mode = #tpu.pipeline_mode<synchronous>, transform_indices = @transform_2, window_bounds = array<i64: 1, 64>}, {transform_indices = @transform_3, window_bounds = array<i64: 32, 64>}]} {
    %c0 = arith.constant 0 : index
    %c0_0 = arith.constant 0 : index
    %0 = vector.load %arg1[%c0, %c0_0] : memref<32x32xf32, #tpu.memory_space<vmem>>, vector<32x32xf32>
    %c0_1 = arith.constant 0 : index
    %c0_2 = arith.constant 0 : index
    %1 = vector.load %arg2[%c0_1, %c0_2] : memref<32x64xf32, #tpu.memory_space<vmem>>, vector<32x64xf32>
    %cst = arith.constant dense<0.000000e+00> : vector<32x64xf32>
    %2 = tpu.matmul %0, %1, %cst {dimension_numbers = #tpu.dot_dimension_numbers<[1], [0], [0], [1], [0, 0, 1, 1], [], []>} : vector<32x32xf32>, vector<32x64xf32>, vector<32x64xf32> -> vector<32x64xf32>
    %c0_3 = arith.constant 0 : index
    %c0_4 = arith.constant 0 : index
    %3 = vector.load %arg3[%c0_3, %c0_4] : memref<1x64xf32, #tpu.memory_space<vmem>>, vector<1x64xf32>
    %4 = vector.broadcast %3 : vector<1x64xf32> to vector<32x64xf32>
    %5 = arith.addf %2, %4 : vector<32x64xf32>
    %c0_5 = arith.constant 0 : index
    %c0_6 = arith.constant 0 : index
    %6 = vector.load %arg4[%c0_5, %c0_6] : memref<32x64xf32, #tpu.memory_space<vmem>>, vector<32x64xf32>
    tpu.vector_store %arg4[%c0_5, %c0_6], %5 {strides = array<i32>} : memref<32x64xf32, #tpu.memory_space<vmem>>, vector<32x64xf32>,
    return
  }
  func.func @transform_0(%arg0: i32) -> (i32, i32) {
    %c0_i32 = arith.constant 0 : i32
    %c0_i32_0 = arith.constant 0 : i32
    return %arg0, %c0_i32 : i32, i32
  }
  func.func @transform_1(%arg0: i32) -> (i32, i32) {
    %c0_i32 = arith.constant 0 : i32
    %c0_i32_0 = arith.constant 0 : i32
    %c0_i32_1 = arith.constant 0 : i32
    return %c0_i32, %c0_i32_0 : i32, i32
  }
  func.func @transform_2(%arg0: i32) -> (i32, i32) {
    %c0_i32 = arith.constant 0 : i32
    %c0_i32_0 = arith.constant 0 : i32
    %c0_i32_1 = arith.constant 0 : i32
    return %c0_i32, %c0_i32_0 : i32, i32
  }
  func.func @transform_3(%arg0: i32) -> (i32, i32) {
    %c0_i32 = arith.constant 0 : i32
    %c0_i32_0 = arith.constant 0 : i32
    return %arg0, %c0_i32 : i32, i32
  }
}

</mosaic_0001>

<llo_original>
// kernel: tpu_custom_call.1
$region0: #{tpu_custom_call.1}
  #allocation0 [shape = 'u32[]', space=smem, size = 0x4, offset = 0x4, fixed_abs, tag = 'smem constant byte address 0x4 - core index']
  #allocation1 [shape = 'u32[72,128]{1,0:T(1,128)}', space=vmem, size = 0x9000, scoped, tag = 'internal scratch']
  %s0 = inlined_call_operand.hbm [shape: f32[32,32], index: 0, kind: input, shape index: {}]
  %s1 = inlined_call_operand.hbm [shape: f32[32,64], index: 1, kind: input, shape index: {}]
  %s2 = inlined_call_operand.vmem [shape: f32[1,64], index: 2, kind: input, shape index: {}]
  %s3 = inlined_call_operand.hbm [shape: f32[32,64], index: 3, kind: output, shape index: {}]
  %s4 = sld [smem:[#allocation0]]
  $region30: #{tpu_custom_call.1} parent=0
    _
  %s6 = ssub.s32 1, %s4
  %s7 = scalar_select 0, %s6, %s4
  $region1: #{tpu_custom_call.1} parent=0
    #allocation2 [shape = 'u8[16384]{0}', space=vmem, size = 0x4000, scoped, tag = 'input window, operand 0, single buffered']
    #allocation3 [shape = 's32[1]{0}', space=sflag, size = 0x4, scoped, tag = 'scoped memory for tpu_custom_call.1']
    #allocation4 [shape = 's32[1]{0}', space=sflag, size = 0x4, scoped, tag = 'scoped memory for tpu_custom_call.1']
    #allocation5 [shape = 'u8[16384]{0}', space=vmem, size = 0x4000, scoped, tag = 'input window, operand 1, single buffered']
    #allocation6 [shape = 's32[1]{0}', space=sflag, size = 0x4, scoped, tag = 'scoped memory for tpu_custom_call.1']
    #allocation7 [shape = 'u8[16384]{0}', space=vmem, size = 0x4000, scoped, tag = 'output window, operand 0, single buffered']
    %8 = vsyncpa [#allocation3], 0
    %9 = vsyncpa [#allocation6], 0
    %10 = vsyncpa [#allocation4], 0
    // Predicated region
    $region2: #{tpu_custom_call.1} parent=1 // pred_check
      _
    $region3: #{tpu_custom_call.1} parent=1 // pred_check_branch
      %12 = sbr.rel (0) target = $region5
    $region4: #{tpu_custom_call.1} parent=1 // pred_region
      %14 = vsyncadd [#allocation3], 0
      %s15 = sshll.u32 %s0, 4
      %s16 = int_to_ptr.hbm [resolvable:$true] %s15
      %s17 = sshll.u32 [#allocation2], 4
      %s18 = int_to_ptr.vmem [resolvable:$true] %s17
      %23 = dma.hbm_to_vmem [thread:$0]  %s16, 512, %s18, [#allocation3], 128, 128, 8
    $region5: #{tpu_custom_call.1} parent=1 // pred_fallthru
      _
    // Predicated region
    $region6: #{tpu_custom_call.1} parent=1 // pred_check
      _
    $region7: #{tpu_custom_call.1} parent=1 // pred_check_branch
      %25 = sbr.rel (0) target = $region9
    $region8: #{tpu_custom_call.1} parent=1 // pred_region
      %27 = vsyncadd [#allocation6], 0
      %s28 = sshll.u32 %s1, 4
      %s29 = int_to_ptr.hbm [resolvable:$true] %s28
      %s30 = sshll.u32 [#allocation5], 4
      %s31 = int_to_ptr.vmem [resolvable:$true] %s30
      %36 = dma.hbm_to_vmem [thread:$0]  %s29, 512, %s31, [#allocation6], 128, 128, 8
    $region9: #{tpu_custom_call.1} parent=1 // pred_fallthru
      _
    // Predicated region
    $region10: #{tpu_custom_call.1} parent=1 // pred_check
      _
    $region11: #{tpu_custom_call.1} parent=1 // pred_check_branch
      %38 = sbr.rel (0) target = $region13
    $region12: #{tpu_custom_call.1} parent=1 // pred_region
      _
    $region13: #{tpu_custom_call.1} parent=1 // pred_fallthru
      _
    // Predicated region
    $region14: #{tpu_custom_call.1} parent=1 // pred_check
      _
    $region15: #{tpu_custom_call.1} parent=1 // pred_check_branch
      %40 = sbr.rel (0) target = $region17
    $region16: #{tpu_custom_call.1} parent=1 // pred_region
      %42 = dma.done [#allocation3], 512
    $region17: #{tpu_custom_call.1} parent=1 // pred_fallthru
      _
    // Predicated region
    $region18: #{tpu_custom_call.1} parent=1 // pred_check
      _
    $region19: #{tpu_custom_call.1} parent=1 // pred_check_branch
      %44 = sbr.rel (0) target = $region21
    $region20: #{tpu_custom_call.1} parent=1 // pred_region
      %46 = dma.done [#allocation6], 512
    $region21: #{tpu_custom_call.1} parent=1 // pred_fallthru
      _
    %v47 = vld [vmem:[#allocation2] sm:$0xff]
    %v48 = vld [vmem:[#allocation2 + $0x8] sm:$0xff]
    %v49 = vld [vmem:[#allocation2 + $0x10] sm:$0xff]
    %v50 = vld [vmem:[#allocation2 + $0x18] sm:$0xff]
    %v51 = vld [vmem:[#allocation5] sm:$0xff]
    %v52 = vld [vmem:[#allocation5 + $0x8] sm:$0xff]
    %v53 = vld [vmem:[#allocation5 + $0x10] sm:$0xff]
    %v54 = vld [vmem:[#allocation5 + $0x18] sm:$0xff]
    %v55 = vld [vmem:[%s2] sm:$0x1]
    %v57 = vperm.slane %v55, 0
    %vm59 = vcmask 261120
    %v61 = vsel %vm59, %v47, 0
    %v64 = vsel %vm59, %v48, 0
    %v67 = vsel %vm59, %v49, 0
    %v70 = vsel %vm59, %v50, 0
    %72 = vmatpush.msra.mxu0 0.0
    %73 = vmatpush.msra.mxu0 0.0
    %74 = vmatpush.msra.mxu0 0.0
    %75 = vmatpush.msra.mxu0 0.0
    %76 = vmatpush.msra.mxu0 0.0
    %77 = vmatpush.msra.mxu0 0.0
    %78 = vmatpush.msra.mxu0 0.0
    %79 = vmatpush.msra.mxu0 0.0
    %80 = vmatpush.msra.mxu0 0.0
    %81 = vmatpush.msra.mxu0 0.0
    %82 = vmatpush.msra.mxu0 0.0
    %83 = vmatpush.msra.mxu0 0.0
    %84 = vmatpush.msra.mxu0 %v54
    %85 = vmatpush.msra.mxu0 %v53
    %86 = vmatpush.msra.mxu0 %v52
    %87 = vmatpush.msra.mxu0 %v51
    %88 = vmatmul.f32.gmra.mxu0 %v61
    %v89 = vpop.f32.mrf.mxu0
    %v90 = vadd.f32 %v57, %v89
    %91 = vmatmul.f32.gmra.mxu0 %v64
    %v92 = vpop.f32.mrf.mxu0
    %v93 = vadd.f32 %v57, %v92
    %94 = vmatmul.f32.gmra.mxu0 %v67
    %v95 = vpop.f32.mrf.mxu0
    %v96 = vadd.f32 %v57, %v95
    %97 = vmatmul.f32.gmra.mxu0 %v70
    %v98 = vpop.f32.mrf.mxu0
    %v99 = vadd.f32 %v57, %v98
    %100 = vdwg.mxu0
    %vm101 = vcmask 523264
    %102 = vst.msk [vmem:[#allocation7] sm:$0xff] %vm101, %v90
    %103 = vst.msk [vmem:[#allocation7 + $0x8] sm:$0xff] %vm101, %v93
    %104 = vst.msk [vmem:[#allocation7 + $0x10] sm:$0xff] %vm101, %v96
    %105 = vst.msk [vmem:[#allocation7 + $0x18] sm:$0xff] %vm101, %v99
    // Predicated region
    $region22: #{tpu_custom_call.1} parent=1 // pred_check
      _
    $region23: #{tpu_custom_call.1} parent=1 // pred_check_branch
      %107 = sbr.rel (0) target = $region25
    $region24: #{tpu_custom_call.1} parent=1 // pred_region
      %109 = vsyncadd [#allocation4], 0
      %s110 = sshll.u32 [#allocation7], 4
      %s111 = int_to_ptr.vmem [resolvable:$true] %s110
      %s112 = sshll.u32 %s3, 4
      %s113 = int_to_ptr.hbm [resolvable:$true] %s112
      %118 = dma.vmem_to_hbm [thread:$0]  %s111, 512, %s113, [#allocation4], 128, 128, 8
    $region25: #{tpu_custom_call.1} parent=1 // pred_fallthru
      _
    // Predicated region
    $region26: #{tpu_custom_call.1} parent=1 // pred_check
      _
    $region27: #{tpu_custom_call.1} parent=1 // pred_check_branch
      %120 = sbr.rel (0) target = $region29
    $region28: #{tpu_custom_call.1} parent=1 // pred_region
      %122 = dma.done [#allocation4], 512
    $region29: #{tpu_custom_call.1} parent=1 // pred_fallthru
      _
    %123 = vsyncpa [#allocation3], 1
    %124 = vsyncpa [#allocation6], 1
    %125 = vsyncpa [#allocation4], 1

</llo_original>
